<compile_context>
chip_gen: v7x
topology: tpu7x:2x2x1
jax: 0.10.0
libtpu: 0.0.40
codegen_flags: <defaults>
</compile_context>

<pallas_src>
import jax
import jax.numpy as jnp
from jax.experimental import pallas as pl
from jax.experimental.pallas import tpu as pltpu


def _round_up(x: int, m: int) -> int:
    return ((x + m - 1) // m) * m


def dqn_kernel(x_ref, w1_ref, b1_ref, w2_ref, b2_ref, w3_ref, b3_ref, o_ref):
    # ---- layer1 + relu1 (x = [state | action] pre-concatenated, bf16) ----
    h1 = jnp.dot(x_ref[...], w1_ref[...], preferred_element_type=jnp.float32)
    h1 = jnp.maximum(h1 + b1_ref[...], 0.0)            # f32 bias + ReLU (VPU)

    # ---- layer2 + relu2 ----
    h2 = jnp.dot(h1.astype(jnp.bfloat16), w2_ref[...],
                 preferred_element_type=jnp.float32)
    h2 = jnp.maximum(h2 + b2_ref[...], 0.0)

    # ---- layer3 (Hp -> 1) as a lane reduction; emit a lane-dense Q row ----
    q = jnp.sum(h2 * w3_ref[...], axis=-1)              # (TB,)
    q = q.reshape(1, 1, -1) + b3_ref[...]                # (1, 1, TB)
    o_ref[...] = q.astype(o_ref.dtype)


def dqn_forward(state, action, params, *, block_b=1024):
    """state: [B, S], action: [B, A] -> Q: [B, 1] (float32)."""
    w1, b1, w2, b2, w3r, b3 = params
    B, S = state.shape
    A = action.shape[1]
    K = S + A
    Hp = w2.shape[1]
    assert w1.shape == (K, Hp)

    # Pre-concatenate once and stream bf16 (numerically identical: the kernel
    # truncates MXU operands to bf16 anyway; halves activation DMA bytes).
    x = jnp.concatenate([state, action], axis=-1).astype(jnp.bfloat16)

    # Batch tiling: TB a multiple of 16, capped by block_b, and >= 2 grid
    # blocks whenever possible so both v7x TensorCores get work.
    Bp16 = _round_up(B, 16)
    max_tb = max(16, _round_up(block_b, 16))
    n_blocks = pl.cdiv(Bp16, max_tb)
    if n_blocks == 1 and Bp16 >= 32:
        n_blocks = 2
    TB = _round_up(pl.cdiv(Bp16, n_blocks), 16)
    Bp = n_blocks * TB
    if Bp != B:
        x = jnp.pad(x, ((0, Bp - B), (0, 0)))

    flops = 2 * Bp * (K * Hp + Hp * Hp + Hp)
    bytes_accessed = int(
        x.size * x.dtype.itemsize                       # bf16 activations
        + Bp * 4                                        # f32 output
        + (w1.size + w2.size) * 2                       # bf16 weights
        + (b1.size + b2.size + w3r.size + b3.size) * 4  # f32 biases / w3 row
    )

    # Explicit scoped-VMEM limit: f32 h1/h2 temporaries (2*TB*Hp*4) plus
    # double-buffered weights can exceed v5e's 16 MiB default at larger TB/Hp.
    weight_bytes = (w1.size + w2.size) * 2 + (b1.size + b2.size + w3r.size + b3.size) * 4
    stream_bytes = TB * K * 2 + TB * 4
    est = 2 * stream_bytes + 2 * weight_bytes + 2 * TB * Hp * 4 + (4 << 20)
    vmem_limit = int(min(max(est, 32 << 20), 64 << 20))

    def const_spec(arr):
        # Constant index_map -> stays VMEM-resident across the whole grid.
        return pl.BlockSpec(arr.shape, lambda i: (0, 0))

    out = pl.pallas_call(
        dqn_kernel,
        out_shape=jax.ShapeDtypeStruct((n_blocks, 1, TB), jnp.float32),
        grid_spec=pltpu.PrefetchScalarGridSpec(
            num_scalar_prefetch=0,
            grid=(n_blocks,),
            in_specs=[
                pl.BlockSpec((TB, K), lambda i: (i, 0)),
                const_spec(w1), const_spec(b1),
                const_spec(w2), const_spec(b2),
                const_spec(w3r), const_spec(b3),
            ],
            out_specs=pl.BlockSpec((1, 1, TB), lambda i: (i, 0, 0)),
        ),
        compiler_params=pltpu.CompilerParams(
            dimension_semantics=("parallel",),
            vmem_limit_bytes=vmem_limit),
        cost_estimate=pl.CostEstimate(
            flops=flops, transcendentals=0, bytes_accessed=bytes_accessed),
    )(x, w1, b1, w2, b2, w3r, b3)

    return out.reshape(-1)[:B].reshape(B, 1)


def init_params(key, state_dim, action_dim, hidden_dim, *, lane_multiple=128):
    """nn.Linear-style U(-1/sqrt(fan_in), 1/sqrt(fan_in)) init.

    The hidden dim is zero-padded to a multiple of `lane_multiple` (128 fills
    the v5e MXU; 256 fully fills v6e/v7x). Padded hidden units produce
    ReLU(0 + 0) = 0 and have zero layer-3 weight, so results are exact.
    MXU weights (W1 with the concat folded in, W2) are stored bf16; biases and
    the layer-3 row (used on the VPU) stay f32.
    """
    def uniform(k, shape, fan_in):
        bound = 1.0 / (float(fan_in) ** 0.5)
        return jax.random.uniform(k, shape, jnp.float32, -bound, bound)

    k1w, k1b, k2w, k2b, k3w, k3b = jax.random.split(key, 6)
    in_dim = state_dim + action_dim
    H = hidden_dim
    Hp = _round_up(H, lane_multiple)
    pad_h = Hp - H

    w1 = uniform(k1w, (in_dim, H), in_dim)      # [in, out] so kernel does x @ W
    b1 = uniform(k1b, (1, H), in_dim)
    w2 = uniform(k2w, (H, H), H)
    b2 = uniform(k2b, (1, H), H)
    w3r = uniform(k3w, (1, H), H)               # layer3 weight as a row
    b3 = uniform(k3b, (1, 1), H)

    w1 = jnp.pad(w1, ((0, 0), (0, pad_h)))
    b1 = jnp.pad(b1, ((0, 0), (0, pad_h)))
    w2 = jnp.pad(w2, ((0, pad_h), (0, pad_h)))
    b2 = jnp.pad(b2, ((0, 0), (0, pad_h)))
    w3r = jnp.pad(w3r, ((0, 0), (0, pad_h)))

    return (w1.astype(jnp.bfloat16), b1,
            w2.astype(jnp.bfloat16), b2,
            w3r, b3)


def _reference_forward(state, action, params):
    """Plain-JAX reference with the same numerics (bf16 MXU operands, f32 acc)."""
    w1, b1, w2, b2, w3r, b3 = params
    x = jnp.concatenate([state, action], axis=-1).astype(jnp.bfloat16)
    h1 = jnp.dot(x, w1, preferred_element_type=jnp.float32)
    h1 = jnp.maximum(h1 + b1, 0.0)
    h2 = jnp.dot(h1.astype(jnp.bfloat16), w2, preferred_element_type=jnp.float32)
    h2 = jnp.maximum(h2 + b2, 0.0)
    return jnp.sum(h2 * w3r, axis=-1, keepdims=True) + b3


if __name__ == "__main__":
    # Small, DQN-critic-like shapes (note: at these toy sizes the kernel is
    # launch-overhead dominated; it pays off at replay-batch sizes >= 1024).
    batch, state_dim, action_dim, hidden_dim = 2, 8, 4, 32

    key = jax.random.PRNGKey(0)
    kp, ks, ka = jax.random.split(key, 3)

    params = init_params(kp, state_dim, action_dim, hidden_dim)
    state = jax.random.normal(ks, (batch, state_dim), jnp.float32)
    action = jax.random.normal(ka, (batch, action_dim), jnp.float32)

    q = dqn_forward(state, action, params)
    q = jax.block_until_ready(q)

    q_ref = _reference_forward(state, action, params)
    assert q.shape == (batch, 1)
    assert jnp.allclose(q, q_ref, atol=1e-3, rtol=1e-3), (q, q_ref)

    print("KERNEL_OK")
</pallas_src>

<mosaic_0001>
module attributes {stable_mosaic.version = 11 : i64} {
  func.func @dqn_kernel(%arg0: i32, %arg1: memref<16x12xbf16, #tpu.memory_space<vmem>>, %arg2: memref<12x128xbf16, #tpu.memory_space<vmem>>, %arg3: memref<1x128xf32, #tpu.memory_space<vmem>>, %arg4: memref<128x128xbf16, #tpu.memory_space<vmem>>, %arg5: memref<1x128xf32, #tpu.memory_space<vmem>>, %arg6: memref<1x128xf32, #tpu.memory_space<vmem>>, %arg7: memref<1x1xf32, #tpu.memory_space<vmem>>, %arg8: memref<1x1x16xf32, #tpu.memory_space<vmem>>) attributes {dimension_semantics = [#tpu.dimension_semantics<parallel>], iteration_bounds = array<i64: 1>, scalar_prefetch = 0 : i64, scratch_operands = 0 : i64, tpu.core_type = #tpu.core_type<tc>, window_params = [{transform_indices = @transform_0, window_bounds = array<i64: 16, 12>}, {pipeline_mode = #tpu.pipeline_mode<synchronous>, transform_indices = @transform_1, window_bounds = array<i64: 12, 128>}, {pipeline_mode = #tpu.pipeline_mode<synchronous>, transform_indices = @transform_2, window_bounds = array<i64: 1, 128>}, {pipeline_mode = #tpu.pipeline_mode<synchronous>, transform_indices = @transform_3, window_bounds = array<i64: 128, 128>}, {pipeline_mode = #tpu.pipeline_mode<synchronous>, transform_indices = @transform_4, window_bounds = array<i64: 1, 128>}, {pipeline_mode = #tpu.pipeline_mode<synchronous>, transform_indices = @transform_5, window_bounds = array<i64: 1, 128>}, {pipeline_mode = #tpu.pipeline_mode<synchronous>, transform_indices = @transform_6, window_bounds = array<i64: 1, 1>}, {transform_indices = @transform_7, window_bounds = array<i64: 1, 1, 16>}]} {
    %c0 = arith.constant 0 : index
    %c0_0 = arith.constant 0 : index
    %0 = vector.load %arg1[%c0, %c0_0] : memref<16x12xbf16, #tpu.memory_space<vmem>>, vector<16x12xbf16>
    %c0_1 = arith.constant 0 : index
    %c0_2 = arith.constant 0 : index
    %1 = vector.load %arg2[%c0_1, %c0_2] : memref<12x128xbf16, #tpu.memory_space<vmem>>, vector<12x128xbf16>
    %cst = arith.constant dense<0.000000e+00> : vector<16x128xf32>
    %2 = tpu.matmul %0, %1, %cst {dimension_numbers = #tpu.dot_dimension_numbers<[1], [0], [0], [1], [0, 0, 1, 1], [], []>} : vector<16x12xbf16>, vector<12x128xbf16>, vector<16x128xf32> -> vector<16x128xf32>
    %c0_3 = arith.constant 0 : index
    %c0_4 = arith.constant 0 : index
    %3 = vector.load %arg3[%c0_3, %c0_4] : memref<1x128xf32, #tpu.memory_space<vmem>>, vector<1x128xf32>
    %4 = vector.broadcast %3 : vector<1x128xf32> to vector<16x128xf32>
    %5 = arith.addf %2, %4 : vector<16x128xf32>
    %cst_5 = arith.constant 0.000000e+00 : f32
    %6 = vector.broadcast %cst_5 : f32 to vector<16x128xf32>
    %7 = arith.maximumf %5, %6 : vector<16x128xf32>
    %8 = arith.truncf %7 : vector<16x128xf32> to vector<16x128xbf16>
    %c0_6 = arith.constant 0 : index
    %c0_7 = arith.constant 0 : index
    %9 = vector.load %arg4[%c0_6, %c0_7] : memref<128x128xbf16, #tpu.memory_space<vmem>>, vector<128x128xbf16>
    %cst_8 = arith.constant dense<0.000000e+00> : vector<16x128xf32>
    %10 = tpu.matmul %8, %9, %cst_8 {dimension_numbers = #tpu.dot_dimension_numbers<[1], [0], [0], [1], [0, 0, 1, 1], [], []>} : vector<16x128xbf16>, vector<128x128xbf16>, vector<16x128xf32> -> vector<16x128xf32>
    %c0_9 = arith.constant 0 : index
    %c0_10 = arith.constant 0 : index
    %11 = vector.load %arg5[%c0_9, %c0_10] : memref<1x128xf32, #tpu.memory_space<vmem>>, vector<1x128xf32>
    %12 = vector.broadcast %11 : vector<1x128xf32> to vector<16x128xf32>
    %13 = arith.addf %10, %12 : vector<16x128xf32>
    %cst_11 = arith.constant 0.000000e+00 : f32
    %14 = vector.broadcast %cst_11 : f32 to vector<16x128xf32>
    %15 = arith.maximumf %13, %14 : vector<16x128xf32>
    %c0_12 = arith.constant 0 : index
    %c0_13 = arith.constant 0 : index
    %16 = vector.load %arg6[%c0_12, %c0_13] : memref<1x128xf32, #tpu.memory_space<vmem>>, vector<1x128xf32>
    %17 = vector.broadcast %16 : vector<1x128xf32> to vector<16x128xf32>
    %18 = arith.mulf %15, %17 : vector<16x128xf32>
    %cst_14 = arith.constant dense<0.000000e+00> : vector<16xf32>
    %19 = vector.multi_reduction <add>, %18, %cst_14 [1] : vector<16x128xf32> to vector<16xf32>
    %20 = vector.shape_cast %19 : vector<16xf32> to vector<1x1x16xf32>
    %c0_15 = arith.constant 0 : index
    %c0_16 = arith.constant 0 : index
    %21 = vector.load %arg7[%c0_15, %c0_16] : memref<1x1xf32, #tpu.memory_space<vmem>>, vector<1x1xf32>
    %22 = vector.shape_cast %21 : vector<1x1xf32> to vector<1x1x1xf32>
    %23 = vector.broadcast %22 : vector<1x1x1xf32> to vector<1x1x16xf32>
    %24 = arith.addf %20, %23 : vector<1x1x16xf32>
    %c0_17 = arith.constant 0 : index
    %c0_18 = arith.constant 0 : index
    %c0_19 = arith.constant 0 : index
    %25 = vector.load %arg8[%c0_17, %c0_18, %c0_19] : memref<1x1x16xf32, #tpu.memory_space<vmem>>, vector<1x1x16xf32>
    tpu.vector_store %arg8[%c0_17, %c0_18, %c0_19], %24 {strides = array<i32>} : memref<1x1x16xf32, #tpu.memory_space<vmem>>, vector<1x1x16xf32>,
    return
  }
  func.func @transform_0(%arg0: i32) -> (i32, i32) {
    %c0_i32 = arith.constant 0 : i32
    %c0_i32_0 = arith.constant 0 : i32
    return %arg0, %c0_i32 : i32, i32
  }
  func.func @transform_1(%arg0: i32) -> (i32, i32) {
    %c0_i32 = arith.constant 0 : i32
    %c0_i32_0 = arith.constant 0 : i32
    %c0_i32_1 = arith.constant 0 : i32
    return %c0_i32, %c0_i32_0 : i32, i32
  }
  func.func @transform_2(%arg0: i32) -> (i32, i32) {
    %c0_i32 = arith.constant 0 : i32
    %c0_i32_0 = arith.constant 0 : i32
    %c0_i32_1 = arith.constant 0 : i32
    return %c0_i32, %c0_i32_0 : i32, i32
  }
  func.func @transform_3(%arg0: i32) -> (i32, i32) {
    %c0_i32 = arith.constant 0 : i32
    %c0_i32_0 = arith.constant 0 : i32
    %c0_i32_1 = arith.constant 0 : i32
    return %c0_i32, %c0_i32_0 : i32, i32
  }
  func.func @transform_4(%arg0: i32) -> (i32, i32) {
    %c0_i32 = arith.constant 0 : i32
    %c0_i32_0 = arith.constant 0 : i32
    %c0_i32_1 = arith.constant 0 : i32
    return %c0_i32, %c0_i32_0 : i32, i32
  }
  func.func @transform_5(%arg0: i32) -> (i32, i32) {
    %c0_i32 = arith.constant 0 : i32
    %c0_i32_0 = arith.constant 0 : i32
    %c0_i32_1 = arith.constant 0 : i32
    return %c0_i32, %c0_i32_0 : i32, i32
  }
  func.func @transform_6(%arg0: i32) -> (i32, i32) {
    %c0_i32 = arith.constant 0 : i32
    %c0_i32_0 = arith.constant 0 : i32
    %c0_i32_1 = arith.constant 0 : i32
    return %c0_i32, %c0_i32_0 : i32, i32
  }
  func.func @transform_7(%arg0: i32) -> (i32, i32, i32) {
    %c0_i32 = arith.constant 0 : i32
    %c0_i32_0 = arith.constant 0 : i32
    %c0_i32_1 = arith.constant 0 : i32
    return %arg0, %c0_i32, %c0_i32_0 : i32, i32, i32
  }
}

</mosaic_0001>

<llo_original>
// kernel: tpu_custom_call.1
$region0: #{tpu_custom_call.1}
  #allocation0 [shape = 'u32[]', space=smem, size = 0x4, offset = 0x4, fixed_abs, tag = 'smem constant byte address 0x4 - core index']
  #allocation1 [shape = 'u32[144,128]{1,0:T(1,128)}', space=vmem, size = 0x12000, scoped, tag = 'internal scratch']
  #allocation2 [shape = 'f32[1,1]{1,0:T(1,128)S(1)}', space=vmem, size = 0x200, scoped, tag = 'scoped memory for tpu_custom_call.1']
  %s0 = inlined_call_operand.hbm [shape: bf16[16,12], index: 0, kind: input, shape index: {}]
  %s1 = inlined_call_operand.hbm [shape: bf16[12,128], index: 1, kind: input, shape index: {}]
  %s2 = inlined_call_operand.vmem [shape: f32[1,128], index: 2, kind: input, shape index: {}]
  %s3 = inlined_call_operand.hbm [shape: bf16[128,128], index: 3, kind: input, shape index: {}]
  %s4 = inlined_call_operand.vmem [shape: f32[1,128], index: 4, kind: input, shape index: {}]
  %s5 = inlined_call_operand.vmem [shape: f32[1,128], index: 5, kind: input, shape index: {}]
  %s6 = inlined_call_operand.<no memory space> [shape: f32[1,1], index: 6, kind: input, shape index: {}]
  %s7 = inlined_call_operand.hbm [shape: f32[1,1,16], index: 7, kind: output, shape index: {}]
  %s8 = sld [smem:[#allocation0]]
  $region50: #{tpu_custom_call.1} parent=0
    _
  %s10 = ssub.s32 1, %s8
  %s11 = scalar_select 0, %s10, %s8
  %v12 = vstv %s6
  %13 = vst [vmem:[#allocation2] sm:$0x1] %v12
  $region1: #{tpu_custom_call.1} parent=0
    #allocation3 [shape = 'u8[4096]{0}', space=vmem, size = 0x1000, scoped, tag = 'input window, operand 0, single buffered']
    #allocation4 [shape = 's32[1]{0}', space=sflag, size = 0x4, scoped, tag = 'scoped memory for tpu_custom_call.1']
    #allocation5 [shape = 's32[1]{0}', space=sflag, size = 0x4, scoped, tag = 'scoped memory for tpu_custom_call.1']
    #allocation6 [shape = 'u8[4096]{0}', space=vmem, size = 0x1000, scoped, tag = 'input window, operand 1, single buffered']
    #allocation7 [shape = 's32[1]{0}', space=sflag, size = 0x4, scoped, tag = 'scoped memory for tpu_custom_call.1']
    #allocation8 [shape = 'u8[32768]{0}', space=vmem, size = 0x8000, scoped, tag = 'input window, operand 3, single buffered']
    #allocation9 [shape = 'u8[512]{0}', space=vmem, size = 0x400, scoped, tag = 'output window, operand 0, single buffered']
    %14 = vsyncpa [#allocation4], 0
    %15 = vsyncpa [#allocation7], 0
    %16 = vsyncpa [#allocation5], 0
    // Predicated region
    $region2: #{tpu_custom_call.1} parent=1 // pred_check
      _
    $region3: #{tpu_custom_call.1} parent=1 // pred_check_branch
      %18 = sbr.rel (0) target = $region5
    $region4: #{tpu_custom_call.1} parent=1 // pred_region
      %s20 = ssub.s32 128, 128
      %21 = vsyncadd [#allocation4], %s20
      %s22 = sshll.u32 [#allocation3], 4
      %s23 = int_to_ptr.vmem [resolvable:$true] %s22
      %28 = dma.hbm_to_vmem [thread:$0]  %s0, 128, %s23, [#allocation4], 64, 64, 4
    $region5: #{tpu_custom_call.1} parent=1 // pred_fallthru
      _
    // Predicated region
    $region6: #{tpu_custom_call.1} parent=1 // pred_check
      _
    $region7: #{tpu_custom_call.1} parent=1 // pred_check_branch
      %30 = sbr.rel (0) target = $region9
    $region8: #{tpu_custom_call.1} parent=1 // pred_region
      %s32 = ssub.s32 128, 128
      %33 = vsyncadd [#allocation7], %s32
      %s34 = sshll.u32 [#allocation6], 4
      %s35 = int_to_ptr.vmem [resolvable:$true] %s34
      %40 = dma.hbm_to_vmem [thread:$0]  %s1, 128, %s35, [#allocation7], 64, 64, 4
    $region9: #{tpu_custom_call.1} parent=1 // pred_fallthru
      _
    // Predicated region
    $region10: #{tpu_custom_call.1} parent=1 // pred_check
      _
    $region11: #{tpu_custom_call.1} parent=1 // pred_check_branch
      %42 = sbr.rel (0) target = $region13
    $region12: #{tpu_custom_call.1} parent=1 // pred_region
      _
    $region13: #{tpu_custom_call.1} parent=1 // pred_fallthru
      _
    // Predicated region
    $region14: #{tpu_custom_call.1} parent=1 // pred_check
      _
    $region15: #{tpu_custom_call.1} parent=1 // pred_check_branch
      %44 = sbr.rel (0) target = $region17
    $region16: #{tpu_custom_call.1} parent=1 // pred_region
      %s46 = ssub.s32 1024, 1024
      %47 = vsyncadd [#allocation7], %s46
      %s48 = sshll.u32 [#allocation8], 4
      %s49 = int_to_ptr.vmem [resolvable:$true] %s48
      %54 = dma.hbm_to_vmem [thread:$0]  %s3, 1024, %s49, [#allocation7], 64, 64, 4
    $region17: #{tpu_custom_call.1} parent=1 // pred_fallthru
      _
    // Predicated region
    $region18: #{tpu_custom_call.1} parent=1 // pred_check
      _
    $region19: #{tpu_custom_call.1} parent=1 // pred_check_branch
      %56 = sbr.rel (0) target = $region21
    $region20: #{tpu_custom_call.1} parent=1 // pred_region
      _
    $region21: #{tpu_custom_call.1} parent=1 // pred_fallthru
      _
    // Predicated region
    $region22: #{tpu_custom_call.1} parent=1 // pred_check
      _
    $region23: #{tpu_custom_call.1} parent=1 // pred_check_branch
      %58 = sbr.rel (0) target = $region25
    $region24: #{tpu_custom_call.1} parent=1 // pred_region
      _
    $region25: #{tpu_custom_call.1} parent=1 // pred_fallthru
      _
    // Predicated region
    $region26: #{tpu_custom_call.1} parent=1 // pred_check
      _
    $region27: #{tpu_custom_call.1} parent=1 // pred_check_branch
      %60 = sbr.rel (0) target = $region29
    $region28: #{tpu_custom_call.1} parent=1 // pred_region
      _
    $region29: #{tpu_custom_call.1} parent=1 // pred_fallthru
      _
    // Predicated region
    $region30: #{tpu_custom_call.1} parent=1 // pred_check
      _
    $region31: #{tpu_custom_call.1} parent=1 // pred_check_branch
      %62 = sbr.rel (0) target = $region33
    $region32: #{tpu_custom_call.1} parent=1 // pred_region
      %63 = dma.done [#allocation4], 128
    $region33: #{tpu_custom_call.1} parent=1 // pred_fallthru
      _
    // Predicated region
    $region34: #{tpu_custom_call.1} parent=1 // pred_check
      _
    $region35: #{tpu_custom_call.1} parent=1 // pred_check_branch
      %65 = sbr.rel (0) target = $region37
    $region36: #{tpu_custom_call.1} parent=1 // pred_region
      %66 = dma.done [#allocation7], 128
    $region37: #{tpu_custom_call.1} parent=1 // pred_fallthru
      _
    // Predicated region
    $region38: #{tpu_custom_call.1} parent=1 // pred_check
      _
    $region39: #{tpu_custom_call.1} parent=1 // pred_check_branch
      %68 = sbr.rel (0) target = $region41
    $region40: #{tpu_custom_call.1} parent=1 // pred_region
      %69 = dma.done [#allocation7], 1024
    $region41: #{tpu_custom_call.1} parent=1 // pred_fallthru
      _
    %v71 = vld [vmem:[#allocation3] sm:$0xf]
    %v72 = vld [vmem:[#allocation3 + $0x4] sm:$0xf]
    %v73 = vld [vmem:[#allocation6] sm:$0xf]
    %v74 = vld [vmem:[#allocation6 + $0x4] sm:$0x3]
    %v75 = vld [vmem:[%s2] sm:$0x1]
    %v77 = vlaneseq
    %v78 = vshrl.u32 %v77, 7
    %v79 = vsub.s32 0, %v78
    %v80 = vrot.slane %v75, %v79
    %v84 = vunpack.c.l.b16 %v71
    %v85 = vunpack.c.l.b16 %v72
    %v86 = vpack.c.b16 %v85, %v84
    %v89 = vunpack.c.l.b16 %v73
    %v90 = vunpack.c.l.b16 %v74
    %v91 = vpack.c.b16 %v90, %v89
    %vm92 = vcmask 97280
    %v94 = vsel %vm92, %v86, 0
    %vm96 = vcmask 1045504
    %v98 = vsel %vm96, %v91, 0
    %100 = vmatprep.subr.bf16.mxu0 0
    %101 = vmatpush1.bf16.msra.mxu0 %v98
    %102 = vmatprep.subr.bf16.mxu0 0
    %103 = vmatpush1.bf16.msra.mxu0 0
    %104 = vmatprep.subr.bf16.mxu0 0
    %105 = vmatpush1.bf16.msra.mxu0 0
    %106 = vmatprep.subr.bf16.mxu0 0
    %107 = vmatpush1.bf16.msra.mxu0 0
    %108 = vmatprep.subr.bf16.mxu0 0
    %109 = vmatpush1.bf16.msra.mxu0 0
    %110 = vmatprep.subr.bf16.mxu0 0
    %111 = vmatpush1.bf16.msra.mxu0 0
    %112 = vmatprep.subr.bf16.mxu0 0
    %113 = vmatpush1.bf16.msra.mxu0 0
    %114 = vmatprep.subr.bf16.mxu0 0
    %115 = vmatpush1.bf16.msra.mxu0 0
    %116 = vmatprep.subr.bf16.mxu0 0
    %117 = vmatpush1.bf16.msra.mxu0 0
    %118 = vmatprep.subr.bf16.mxu0 0
    %119 = vmatpush1.bf16.msra.mxu0 0
    %120 = vmatprep.subr.bf16.mxu0 0
    %121 = vmatpush1.bf16.msra.mxu0 0
    %122 = vmatprep.subr.bf16.mxu0 0
    %123 = vmatpush1.bf16.msra.mxu0 0
    %124 = vmatprep.subr.bf16.mxu0 0
    %125 = vmatpush1.bf16.msra.mxu0 0
    %126 = vmatprep.subr.bf16.mxu0 0
    %127 = vmatpush1.bf16.msra.mxu0 0
    %128 = vmatprep.subr.bf16.mxu0 0
    %129 = vmatpush1.bf16.msra.mxu0 0
    %130 = vmatprep.subr.bf16.mxu0 0
    %131 = vmatpush1.bf16.msra.mxu0 0
    %132 = vmatprep.mubr.bf16.mxu0 0
    %133 = vmatmul.mubr.bf16.gmra.mrb[0].mxu0 %v94
    %v134 = vpop.f32.mrb[0].mxu0
    %v135 = vadd.f32 %v80, %v134
    %v136 = vpop.f32.mrb[0].mxu0
    %v137 = vpop.f32.mrb[0].mxu0
    %v138 = vadd.f32 %v80, %v137
    %v139 = vpop.f32.mrb[0].mxu0
    %140 = vdwg.mxu0
    %v141 = vmax.f32 %v135, 0.0
    %v142 = vmax.f32 %v138, 0.0
    %v143 = vpack.c.bf16 %v142, %v141
    %v144 = vld [vmem:[#allocation8] sm:$0xf]
    %v145 = vld [vmem:[#allocation8 + $0x4] sm:$0xf]
    %v146 = vld [vmem:[#allocation8 + $0x8] sm:$0xf]
    %v147 = vld [vmem:[#allocation8 + $0xc] sm:$0xf]
    %v148 = vld [vmem:[#allocation8 + $0x10] sm:$0xf]
    %v149 = vld [vmem:[#allocation8 + $0x14] sm:$0xf]
    %v150 = vld [vmem:[#allocation8 + $0x18] sm:$0xf]
    %v151 = vld [vmem:[#allocation8 + $0x1c] sm:$0xf]
    %v152 = vld [vmem:[#allocation8 + $0x20] sm:$0xf]
    %v153 = vld [vmem:[#allocation8 + $0x24] sm:$0xf]
    %v154 = vld [vmem:[#allocation8 + $0x28] sm:$0xf]
    %v155 = vld [vmem:[#allocation8 + $0x2c] sm:$0xf]
    %v156 = vld [vmem:[#allocation8 + $0x30] sm:$0xf]
    %v157 = vld [vmem:[#allocation8 + $0x34] sm:$0xf]
    %v158 = vld [vmem:[#allocation8 + $0x38] sm:$0xf]
    %v159 = vld [vmem:[#allocation8 + $0x3c] sm:$0xf]
    %v160 = vld [vmem:[%s4] sm:$0x1]
    %v162 = vlaneseq
    %v163 = vshrl.u32 %v162, 7
    %v164 = vsub.s32 0, %v163
    %v165 = vrot.slane %v160, %v164
    %v183 = vunpack.c.l.b16 %v144
    %v184 = vunpack.c.l.b16 %v145
    %v185 = vunpack.c.l.b16 %v146
    %v186 = vunpack.c.l.b16 %v147
    %v187 = vunpack.c.l.b16 %v148
    %v188 = vunpack.c.l.b16 %v149
    %v189 = vunpack.c.l.b16 %v150
    %v190 = vunpack.c.l.b16 %v151
    %v191 = vunpack.c.l.b16 %v152
    %v192 = vunpack.c.l.b16 %v153
    %v193 = vunpack.c.l.b16 %v154
    %v194 = vunpack.c.l.b16 %v155
    %v195 = vunpack.c.l.b16 %v156
    %v196 = vunpack.c.l.b16 %v157
    %v197 = vunpack.c.l.b16 %v158
    %v198 = vunpack.c.l.b16 %v159
    %v199 = vpack.c.b16 %v184, %v183
    %v200 = vpack.c.b16 %v186, %v185
    %v201 = vpack.c.b16 %v188, %v187
    %v202 = vpack.c.b16 %v190, %v189
    %v203 = vpack.c.b16 %v192, %v191
    %v204 = vpack.c.b16 %v194, %v193
    %v205 = vpack.c.b16 %v196, %v195
    %v206 = vpack.c.b16 %v198, %v197
    %215 = vmatprep.subr.bf16.mxu0 0
    %216 = vmatpush1.bf16.msra.mxu0 %v199
    %217 = vmatprep.subr.bf16.mxu0 0
    %218 = vmatpush1.bf16.msra.mxu0 %v200
    %219 = vmatprep.subr.bf16.mxu0 0
    %220 = vmatpush1.bf16.msra.mxu0 %v201
    %221 = vmatprep.subr.bf16.mxu0 0
    %222 = vmatpush1.bf16.msra.mxu0 %v202
    %223 = vmatprep.subr.bf16.mxu0 0
    %224 = vmatpush1.bf16.msra.mxu0 %v203
    %225 = vmatprep.subr.bf16.mxu0 0
    %226 = vmatpush1.bf16.msra.mxu0 %v204
    %227 = vmatprep.subr.bf16.mxu0 0
    %228 = vmatpush1.bf16.msra.mxu0 %v205
    %229 = vmatprep.subr.bf16.mxu0 0
    %230 = vmatpush1.bf16.msra.mxu0 %v206
    %231 = vmatprep.subr.bf16.mxu0 0
    %232 = vmatpush1.bf16.msra.mxu0 0
    %233 = vmatprep.subr.bf16.mxu0 0
    %234 = vmatpush1.bf16.msra.mxu0 0
    %235 = vmatprep.subr.bf16.mxu0 0
    %236 = vmatpush1.bf16.msra.mxu0 0
    %237 = vmatprep.subr.bf16.mxu0 0
    %238 = vmatpush1.bf16.msra.mxu0 0
    %239 = vmatprep.subr.bf16.mxu0 0
    %240 = vmatpush1.bf16.msra.mxu0 0
    %241 = vmatprep.subr.bf16.mxu0 0
    %242 = vmatpush1.bf16.msra.mxu0 0
    %243 = vmatprep.subr.bf16.mxu0 0
    %244 = vmatpush1.bf16.msra.mxu0 0
    %245 = vmatprep.subr.bf16.mxu0 0
    %246 = vmatpush1.bf16.msra.mxu0 0
    %247 = vmatprep.mubr.bf16.mxu0 0
    %248 = vmatmul.mubr.bf16.gmra.mrb[0].mxu0 %v143
    %v249 = vpop.f32.mrb[0].mxu0
    %v250 = vadd.f32 %v165, %v249
    %v251 = vpop.f32.mrb[0].mxu0
    %v252 = vpop.f32.mrb[0].mxu0
    %v253 = vadd.f32 %v165, %v252
    %v254 = vpop.f32.mrb[0].mxu0
    %255 = vdwg.mxu0
    %v256 = vmax.f32 %v250, 0.0
    %v257 = vmax.f32 %v253, 0.0
    %v258 = vld [vmem:[%s5] sm:$0x1]
    %v260 = vlaneseq
    %v261 = vshrl.u32 %v260, 7
    %v262 = vsub.s32 0, %v261
    %v263 = vrot.slane %v258, %v262
    %v265 = vmul.f32 %v256, %v263
    %v266 = vmul.f32 %v257, %v263
    %267 = vadd.xlane.f32.xlu0 %v265
    %v268 = vpop.xlane.xlu0 %267
    %269 = vadd.xlane.f32.xlu0 %v266
    %v270 = vpop.xlane.xlu0 %269
    %v271 = vld [vmem:[#allocation2] sm:$0x1]
    %273 = vset.pattern.permute.xlu0 0
    %274 = vperm.xlu0 %273, %v271
    %v275 = vpop.permute.xlu0 %274
    %v277 = vlaneseq
    %v278 = vshrl.u32 %v277, 7
    %v279 = vsub.s32 0, %v278
    %v280 = vrot.slane %v275, %v279
    %v281 = vadd.f32 %v268, %v280
    %v282 = vadd.f32 %v270, %v280
    %v285 = vlaneseq
    %v286 = vand.u32 %v285, 127
    %v287 = vlaneseq
    %v288 = vshrl.u32 %v287, 7
    %v289 = vsub.s32 %v286, %v288
    %v290 = vrot.slane %v281, %v289
    %v291 = vadd.s32 %v286, 4294967288
    %v292 = vlaneseq
    %v293 = vshrl.u32 %v292, 7
    %v294 = vsub.s32 %v291, %v293
    %v295 = vrot.slane %v282, %v294
    %vm296 = vcmask 130112
    %v297 = vsel %vm296, %v295, %v290
    %vm299 = vcmask 122880
    %300 = vst.msk [vmem:[#allocation9] sm:$0x1] %vm299, %v297
    // Predicated region
    $region42: #{tpu_custom_call.1} parent=1 // pred_check
      _
    $region43: #{tpu_custom_call.1} parent=1 // pred_check_branch
      %302 = sbr.rel (0) target = $region45
    $region44: #{tpu_custom_call.1} parent=1 // pred_region
      %s304 = ssub.s32 16, 16
      %305 = vsyncadd [#allocation5], %s304
      %s307 = sshll.u32 [#allocation9], 4
      %s308 = int_to_ptr.vmem [resolvable:$true] %s307
      %310 = dma.vmem_to_hbm [thread:$0]  %s308, 16, %s7, [#allocation5]
    $region45: #{tpu_custom_call.1} parent=1 // pred_fallthru
      _
    // Predicated region
    $region46: #{tpu_custom_call.1} parent=1 // pred_check
      _
    $region47: #{tpu_custom_call.1} parent=1 // pred_check_branch
      %312 = sbr.rel (0) target = $region49
    $region48: #{tpu_custom_call.1} parent=1 // pred_region
      %313 = dma.done [#allocation5], 16
    $region49: #{tpu_custom_call.1} parent=1 // pred_fallthru
      _
    %314 = vsyncpa [#allocation4], 1
    %315 = vsyncpa [#allocation7], 1
    %316 = vsyncpa [#allocation5], 1

</llo_original>
